<compile_context>
chip_gen: v7x
topology: tpu7x:2x2x1
jax: 0.10.0
libtpu: 0.0.40
codegen_flags: <defaults>
</compile_context>

<pallas_src>
import numpy as np
import jax
import jax.numpy as jnp
from jax.experimental import pallas as pl
from jax.experimental.pallas import tpu as pltpu

# ---------------- static (small synthetic) configuration ----------------
B = 2                      # batch
N_FFT = 16                 # mel_spec.n_fft
HOP = 4                    # mel_spec.hop_length
WIN = 16                   # mel_spec.win_length (hann window registered in __init__)
F = N_FFT // 2 + 1         # 9 freq bins (one-sided spectrum)
T = 8                      # frames
TF = T * F                 # 72
L_FULL = N_FFT + (T - 1) * HOP   # 44  raw overlap-add length
TRIM = N_FFT // 2                # 8   center=True trim
L_OUT = (T - 1) * HOP            # 28  torch.istft default output length
D_TEXT = 8                 # synthetic text-cond dim
N_TEXT = 6                 # text tokens per item
VOCAB = 16
FRAC_LO, FRAC_HI = 0.7, 1.0      # frac_lengths_mask
EPS = 1e-12
K_ACT = TF + D_TEXT + 1          # 81 = [gmag_flat | text_cond | 1]
NUMEL = float(B * F * T)         # spec/phase losses are .mean() over the FULL tensor
                                 # in the reference (mask only zeroes entries)


# ---------------- fused Pallas kernel ----------------
def cfm_fused_kernel(bounds_ref, gt_ref, act_ref, w_ref, basis_ref, out_ref):
    # gt channels via cheap leading-axis indexing of one operand
    gmag = gt_ref[0]                       # [B, T*F] f32 (frame-major, freq -> lanes)
    gsin = gt_ref[1]
    gcos = gt_ref[2]
    act = act_ref[...]                     # [B, K_ACT] bf16  ([gmag | text_cond | 1])

    # ---- "predict": three per-channel bf16 MXU dots, f32 accumulation ----
    # Each output is a lane-0 aligned [B, T*F] block (no unaligned lane slices).
    # TODO(synk): the real CFM delegates `predict` to an external `transformer`
    # nn.Module that is not defined in the reference; this deterministic per-frame
    # linear layer (frame-block-diagonal weight, bias folded via ones column)
    # stands in for it.
    pmag = jnp.dot(act, w_ref[0], preferred_element_type=jnp.float32)
    psin = jnp.dot(act, w_ref[1], preferred_element_type=jnp.float32)
    pcos = jnp.dot(act, w_ref[2], preferred_element_type=jnp.float32)

    # ---- fractional-length mask: [B,1] broadcast compare (no unrolled selects) ----
    start_col = bounds_ref[0]              # [B, 1] int32
    end_col = bounds_ref[1]                # [B, 1] int32
    e_idx = jax.lax.broadcasted_iota(jnp.int32, (B, TF), 1)
    # frame-major flat layout: masked frames [start, end) == elements [start*F, end*F)
    mask = ((e_idx >= start_col * F) & (e_idx < end_col * F)).astype(jnp.float32)

    # ---- spec/phase masked MSE: one fused lane-reduce tree ----
    spec_err = (pmag - gmag) ** 2 * mask
    phase_err = ((psin - gsin) ** 2 + (pcos - gcos) ** 2) * mask
    errs = jnp.concatenate([spec_err, phase_err], axis=0)       # [2B, T*F] sublane-stacked
    row_sums = jnp.sum(errs, axis=1, keepdims=True)             # [2B, 1]
    spec_sum = jnp.sum(row_sums[:B])
    phase_sum = jnp.sum(row_sums[B:])

    # ---- sublane-pack pred & gt, single real/imag pass ----
    mag_all = jnp.concatenate([pmag, gmag], axis=0)             # [2B, T*F]
    sin_all = jnp.concatenate([psin, gsin], axis=0)
    cos_all = jnp.concatenate([pcos, gcos], axis=0)
    # torch: phase = atan2(s, c); real = exp(mag)*cos(phase); imag = exp(mag)*sin(phase)
    mag = jnp.exp(mag_all)
    denom = sin_all * sin_all + cos_all * cos_all
    inv = jax.lax.rsqrt(jnp.maximum(denom, EPS))
    is_zero = denom <= 0.0                                      # atan2(0,0)=0 -> cos=1, sin=0
    real_all = mag * jnp.where(is_zero, 1.0, cos_all * inv)
    imag_all = mag * jnp.where(is_zero, 0.0, sin_all * inv)

    # ---- iSTFT (linear in real/imag) applied to the pred-gt DIFFERENCE ----
    # f32 MXU path on purpose: matches torch.istft precision, MXU is far from bound.
    real_diff = real_all[:B] - real_all[B:]                     # [B, T*F]
    imag_diff = imag_all[:B] - imag_all[B:]
    audio_diff = (jnp.dot(real_diff, basis_ref[0], preferred_element_type=jnp.float32)
                  + jnp.dot(imag_diff, basis_ref[1], preferred_element_type=jnp.float32))
    recon_sum = jnp.sum(jnp.abs(audio_diff))                    # L1 sum over [B, L_OUT]

    # ---- finalize total loss in-kernel (static normalizers) ----
    out_ref[0] = (spec_sum * (1.0 / NUMEL)
                  + phase_sum * (1.0 / NUMEL)
                  + 0.5 * recon_sum * (1.0 / float(B * L_OUT)))


# ---------------- constants / parameter setup (glue) ----------------
def build_istft_basis():
    n = np.arange(N_FFT)
    k = np.arange(F)
    # periodic hann window (torch.hann_window default), win_length == n_fft
    window = 0.5 * (1.0 - np.cos(2.0 * np.pi * n / WIN))
    wk = np.where((k == 0) | (k == N_FFT // 2), 1.0, 2.0)       # irfft hermitian weights
    ang = 2.0 * np.pi * np.outer(k, n) / N_FFT
    cw = (wk[:, None] * np.cos(ang)) * window[None, :] / N_FFT   # [F, N_FFT]
    sw = (-wk[:, None] * np.sin(ang)) * window[None, :] / N_FFT  # [F, N_FFT]
    bigc = np.zeros((TF, L_FULL), np.float64)
    bigs = np.zeros((TF, L_FULL), np.float64)
    for t in range(T):
        bigc[t * F:(t + 1) * F, t * HOP:t * HOP + N_FFT] = cw
        bigs[t * F:(t + 1) * F, t * HOP:t * HOP + N_FFT] = sw
    env = np.zeros(L_FULL, np.float64)
    for t in range(T):
        env[t * HOP:t * HOP + N_FFT] += window ** 2
    inv_env = 1.0 / env[TRIM:TRIM + L_OUT]
    # fold center-trim + inverse window-envelope into the basis; cos/sin split on a
    # leading axis so the kernel avoids any non-128-aligned lane concatenation.
    bigc_f = (bigc[:, TRIM:TRIM + L_OUT] * inv_env[None, :]).astype(np.float32)
    bigs_f = (bigs[:, TRIM:TRIM + L_OUT] * inv_env[None, :]).astype(np.float32)
    basis = np.stack([bigc_f, bigs_f], axis=0)                   # [2, T*F, L_OUT] f32
    # TODO(synk): at real F5-TTS sizes this dense [T*F, L] basis is O(T^2) and would not
    # fit v7x's 64 MiB VMEM; replace with per-frame irfft [F, N_FFT] + a gridded,
    # accumulated overlap-add (parallel batch/frame grid axes to use both v7x TCs).
    return jnp.asarray(basis)


def init_params(key):
    k1, k2, k3, k4 = jax.random.split(key, 4)
    wf = np.asarray(jax.random.normal(k1, (F, 3 * F), jnp.float32)) * 0.1
    wd = np.asarray(jax.random.normal(k2, (D_TEXT, 3 * F), jnp.float32)) * 0.1
    bb = np.asarray(jax.random.normal(k3, (1, 3 * F), jnp.float32)) * 0.01
    text_emb = jax.random.normal(k4, (VOCAB, D_TEXT), jnp.float32) * 0.1

    # One per-channel weight [K_ACT, T*F]: rows 0..TF-1 frame-block-diagonal (gmag),
    # rows TF..TF+D-1 text-cond, last row = bias (activated by the ones column).
    # Kept as 3 separate N=TF matrices (stacked on a leading axis) so each predict
    # output is lane-0 aligned and fits a single MXU pass on v6e/v7x (N=72 <= 256).
    w_all = np.zeros((3, K_ACT, TF), np.float32)
    for c in range(3):
        for t in range(T):
            col = slice(t * F, (t + 1) * F)
            w_all[c, t * F:(t + 1) * F, col] = wf[:, c * F:(c + 1) * F]
            w_all[c, TF:TF + D_TEXT, col] = wd[:, c * F:(c + 1) * F]
            w_all[c, TF + D_TEXT, col] = bb[0, c * F:(c + 1) * F]

    return dict(
        w_all=jnp.asarray(w_all).astype(jnp.bfloat16),   # predict MXU operands in bf16
        text_emb=text_emb,
        basis=build_istft_basis(),                       # f32 (matches torch.istft)
    )


# ---------------- wrapper ----------------
def cfm_forward(mel, text, text_lengths, mel_lengths, params, key):
    """Reproduces CFM.forward(batch, return_loss=True)."""
    # ---- get_text_cond stand-in (glue) ----
    # TODO(synk): `get_text_cond` is not defined in the reference module; a masked mean
    # over a deterministic embedding table stands in.
    emb = params["text_emb"][text]                                    # [B, NT, D]
    tmask = (jnp.arange(N_TEXT)[None, :] < text_lengths[:, None]).astype(jnp.float32)
    text_cond = (emb * tmask[..., None]).sum(1) / jnp.maximum(
        text_lengths[:, None].astype(jnp.float32), 1.0)               # [B, D]

    # ONE host-side transpose: [B,3,F,T] -> [3,B,T,F] -> [3,B,T*F] (freq fastest -> lanes)
    gt = jnp.transpose(mel, (1, 0, 3, 2)).reshape(3, B, TF)

    # ---- mask_from_frac_lengths scalars (glue; deterministic via fixed PRNG key) ----
    k1, k2 = jax.random.split(key)
    frac = jax.random.uniform(k1, (B,), minval=FRAC_LO, maxval=FRAC_HI)
    lengths = (frac * mel_lengths).astype(jnp.int32)
    max_start = mel_lengths - lengths
    start = jnp.maximum((max_start * jax.random.uniform(k2, (B,))).astype(jnp.int32), 0)
    end = start + lengths
    bounds = jnp.stack([start, end], axis=0).reshape(2, B, 1).astype(jnp.int32)

    # predict activation: [gmag_flat | text_cond | 1] in bf16 (MXU operand)
    act = jnp.concatenate(
        [gt[0], text_cond, jnp.ones((B, 1), jnp.float32)], axis=1).astype(jnp.bfloat16)

    # TODO(synk): at real F5-TTS sizes add a ("parallel", ...) grid over batch/frames so
    # both v7x TensorCores are used; at this toy size a single grid-less program is best.
    total = pl.pallas_call(
        cfm_fused_kernel,
        out_shape=jax.ShapeDtypeStruct((1,), jnp.float32),
        in_specs=[pl.BlockSpec(memory_space=pltpu.MemorySpace.VMEM),   # bounds [2,B,1] i32
                  pl.BlockSpec(memory_space=pltpu.MemorySpace.VMEM),   # gt     [3,B,TF] f32
                  pl.BlockSpec(memory_space=pltpu.MemorySpace.VMEM),   # act    [B,K]    bf16
                  pl.BlockSpec(memory_space=pltpu.MemorySpace.VMEM),   # w_all  [3,K,TF] bf16
                  pl.BlockSpec(memory_space=pltpu.MemorySpace.VMEM)],  # basis  [2,TF,L] f32
        out_specs=pl.BlockSpec(memory_space=pltpu.MemorySpace.SMEM),
    )(bounds, gt, act, params["w_all"], params["basis"])
    return total[0]


if __name__ == "__main__":
    key = jax.random.PRNGKey(0)
    k_param, k_mel, k_text, k_mask = jax.random.split(key, 4)

    params = init_params(k_param)
    mel = jax.random.normal(k_mel, (B, 3, F, T), jnp.float32)        # batch['mel_spec']
    text = jax.random.randint(k_text, (B, N_TEXT), 0, VOCAB)         # batch['text']
    text_lengths = jnp.array([N_TEXT, N_TEXT - 2], jnp.int32)
    mel_lengths = jnp.array([T, T - 2], jnp.int32)

    total_loss = jax.jit(cfm_forward)(mel, text, text_lengths, mel_lengths, params, k_mask)
    total_loss = jax.block_until_ready(total_loss)
    assert total_loss.shape == () and bool(jnp.isfinite(total_loss))
    print("KERNEL_OK")
</pallas_src>

<mosaic_0001>
module attributes {stable_mosaic.version = 11 : i64} {
  func.func @cfm_fused_kernel(%arg0: memref<2x2x1xi32, #tpu.memory_space<vmem>>, %arg1: memref<3x2x72xf32, #tpu.memory_space<vmem>>, %arg2: memref<2x81xbf16, #tpu.memory_space<vmem>>, %arg3: memref<3x81x72xbf16, #tpu.memory_space<vmem>>, %arg4: memref<2x72x28xf32, #tpu.memory_space<vmem>>, %arg5: memref<1xf32, #tpu.memory_space<smem>>) attributes {dimension_semantics = [], scalar_prefetch = 0 : i64, scratch_operands = 0 : i64, tpu.core_type = #tpu.core_type<tc>} {
    %c0 = arith.constant 0 : index
    %c0_0 = arith.constant 0 : index
    %c0_1 = arith.constant 0 : index
    %0 = vector.load %arg1[%c0, %c0_0, %c0_1] : memref<3x2x72xf32, #tpu.memory_space<vmem>>, vector<1x2x72xf32>
    %1 = vector.shape_cast %0 : vector<1x2x72xf32> to vector<2x72xf32>
    %c1 = arith.constant 1 : index
    %c0_2 = arith.constant 0 : index
    %c0_3 = arith.constant 0 : index
    %2 = vector.load %arg1[%c1, %c0_2, %c0_3] : memref<3x2x72xf32, #tpu.memory_space<vmem>>, vector<1x2x72xf32>
    %3 = vector.shape_cast %2 : vector<1x2x72xf32> to vector<2x72xf32>
    %c2 = arith.constant 2 : index
    %c0_4 = arith.constant 0 : index
    %c0_5 = arith.constant 0 : index
    %4 = vector.load %arg1[%c2, %c0_4, %c0_5] : memref<3x2x72xf32, #tpu.memory_space<vmem>>, vector<1x2x72xf32>
    %5 = vector.shape_cast %4 : vector<1x2x72xf32> to vector<2x72xf32>
    %c0_6 = arith.constant 0 : index
    %c0_7 = arith.constant 0 : index
    %6 = vector.load %arg2[%c0_6, %c0_7] : memref<2x81xbf16, #tpu.memory_space<vmem>>, vector<2x81xbf16>
    %c0_8 = arith.constant 0 : index
    %c0_9 = arith.constant 0 : index
    %c0_10 = arith.constant 0 : index
    %7 = vector.load %arg3[%c0_8, %c0_9, %c0_10] : memref<3x81x72xbf16, #tpu.memory_space<vmem>>, vector<1x81x72xbf16>
    %8 = vector.shape_cast %7 : vector<1x81x72xbf16> to vector<81x72xbf16>
    %cst = arith.constant dense<0.000000e+00> : vector<2x72xf32>
    %9 = tpu.matmul %6, %8, %cst {dimension_numbers = #tpu.dot_dimension_numbers<[1], [0], [0], [1], [0, 0, 1, 1], [], []>} : vector<2x81xbf16>, vector<81x72xbf16>, vector<2x72xf32> -> vector<2x72xf32>
    %c1_11 = arith.constant 1 : index
    %c0_12 = arith.constant 0 : index
    %c0_13 = arith.constant 0 : index
    %10 = vector.load %arg3[%c1_11, %c0_12, %c0_13] : memref<3x81x72xbf16, #tpu.memory_space<vmem>>, vector<1x81x72xbf16>
    %11 = vector.shape_cast %10 : vector<1x81x72xbf16> to vector<81x72xbf16>
    %cst_14 = arith.constant dense<0.000000e+00> : vector<2x72xf32>
    %12 = tpu.matmul %6, %11, %cst_14 {dimension_numbers = #tpu.dot_dimension_numbers<[1], [0], [0], [1], [0, 0, 1, 1], [], []>} : vector<2x81xbf16>, vector<81x72xbf16>, vector<2x72xf32> -> vector<2x72xf32>
    %c2_15 = arith.constant 2 : index
    %c0_16 = arith.constant 0 : index
    %c0_17 = arith.constant 0 : index
    %13 = vector.load %arg3[%c2_15, %c0_16, %c0_17] : memref<3x81x72xbf16, #tpu.memory_space<vmem>>, vector<1x81x72xbf16>
    %14 = vector.shape_cast %13 : vector<1x81x72xbf16> to vector<81x72xbf16>
    %cst_18 = arith.constant dense<0.000000e+00> : vector<2x72xf32>
    %15 = tpu.matmul %6, %14, %cst_18 {dimension_numbers = #tpu.dot_dimension_numbers<[1], [0], [0], [1], [0, 0, 1, 1], [], []>} : vector<2x81xbf16>, vector<81x72xbf16>, vector<2x72xf32> -> vector<2x72xf32>
    %c0_19 = arith.constant 0 : index
    %c0_20 = arith.constant 0 : index
    %c0_21 = arith.constant 0 : index
    %16 = vector.load %arg0[%c0_19, %c0_20, %c0_21] : memref<2x2x1xi32, #tpu.memory_space<vmem>>, vector<1x2x1xi32>
    %17 = vector.shape_cast %16 : vector<1x2x1xi32> to vector<2x1xi32>
    %c1_22 = arith.constant 1 : index
    %c0_23 = arith.constant 0 : index
    %c0_24 = arith.constant 0 : index
    %18 = vector.load %arg0[%c1_22, %c0_23, %c0_24] : memref<2x2x1xi32, #tpu.memory_space<vmem>>, vector<1x2x1xi32>
    %19 = vector.shape_cast %18 : vector<1x2x1xi32> to vector<2x1xi32>
    %20 = tpu.iota {dimensions = array<i32: 1>} : vector<2x72xi32>
    %c9_i32 = arith.constant 9 : i32
    %21 = vector.broadcast %c9_i32 : i32 to vector<2x1xi32>
    %22 = arith.muli %17, %21 : vector<2x1xi32>
    %23 = vector.broadcast %22 : vector<2x1xi32> to vector<2x72xi32>
    %24 = arith.cmpi sge, %20, %23 : vector<2x72xi32>
    %c9_i32_25 = arith.constant 9 : i32
    %25 = vector.broadcast %c9_i32_25 : i32 to vector<2x1xi32>
    %26 = arith.muli %19, %25 : vector<2x1xi32>
    %27 = vector.broadcast %26 : vector<2x1xi32> to vector<2x72xi32>
    %28 = arith.cmpi slt, %20, %27 : vector<2x72xi32>
    %29 = arith.andi %24, %28 : vector<2x72xi1>
    %30 = arith.extui %29 : vector<2x72xi1> to vector<2x72xi32>
    %31 = arith.sitofp %30 : vector<2x72xi32> to vector<2x72xf32>
    %32 = arith.subf %9, %1 : vector<2x72xf32>
    %33 = arith.mulf %32, %32 : vector<2x72xf32>
    %34 = arith.mulf %33, %31 : vector<2x72xf32>
    %35 = arith.subf %12, %3 : vector<2x72xf32>
    %36 = arith.mulf %35, %35 : vector<2x72xf32>
    %37 = arith.subf %15, %5 : vector<2x72xf32>
    %38 = arith.mulf %37, %37 : vector<2x72xf32>
    %39 = arith.addf %36, %38 : vector<2x72xf32>
    %40 = arith.mulf %39, %31 : vector<2x72xf32>
    %41 = tpu.concatenate %34, %40 in 0 : vector<2x72xf32>, vector<2x72xf32> -> vector<4x72xf32>
    %cst_26 = arith.constant dense<0.000000e+00> : vector<4xf32>
    %42 = vector.multi_reduction <add>, %41, %cst_26 [1] : vector<4x72xf32> to vector<4xf32>
    %43 = vector.shape_cast %42 : vector<4xf32> to vector<4x1xf32>
    %44 = vector.extract_strided_slice %43 {offsets = [0, 0], sizes = [2, 1], strides = [1, 1]} : vector<4x1xf32> to vector<2x1xf32>
    %45 = vector.shape_cast %44 : vector<2x1xf32> to vector<1x2x1xf32>
    %cst_27 = arith.constant dense<0.000000e+00> : vector<1xf32>
    %46 = vector.multi_reduction <add>, %45, %cst_27 [1, 2] : vector<1x2x1xf32> to vector<1xf32>
    %47 = vector.shape_cast %46 : vector<1xf32> to vector<1x1x1xf32>
    %48 = vector.extract %47[0, 0, 0] : f32 from vector<1x1x1xf32>
    %49 = vector.extract_strided_slice %43 {offsets = [2, 0], sizes = [2, 1], strides = [1, 1]} : vector<4x1xf32> to vector<2x1xf32>
    %50 = vector.shape_cast %49 : vector<2x1xf32> to vector<1x2x1xf32>
    %cst_28 = arith.constant dense<0.000000e+00> : vector<1xf32>
    %51 = vector.multi_reduction <add>, %50, %cst_28 [1, 2] : vector<1x2x1xf32> to vector<1xf32>
    %52 = vector.shape_cast %51 : vector<1xf32> to vector<1x1x1xf32>
    %53 = vector.extract %52[0, 0, 0] : f32 from vector<1x1x1xf32>
    %54 = tpu.concatenate %9, %1 in 0 : vector<2x72xf32>, vector<2x72xf32> -> vector<4x72xf32>
    %55 = tpu.concatenate %12, %3 in 0 : vector<2x72xf32>, vector<2x72xf32> -> vector<4x72xf32>
    %56 = tpu.concatenate %15, %5 in 0 : vector<2x72xf32>, vector<2x72xf32> -> vector<4x72xf32>
    %57 = math.exp %54 : vector<4x72xf32>
    %58 = arith.mulf %55, %55 : vector<4x72xf32>
    %59 = arith.mulf %56, %56 : vector<4x72xf32>
    %60 = arith.addf %58, %59 : vector<4x72xf32>
    %cst_29 = arith.constant 9.99999996E-13 : f32
    %61 = vector.broadcast %cst_29 : f32 to vector<4x72xf32>
    %62 = arith.maximumf %60, %61 : vector<4x72xf32>
    %63 = math.rsqrt %62 : vector<4x72xf32>
    %cst_30 = arith.constant 0.000000e+00 : f32
    %64 = vector.broadcast %cst_30 : f32 to vector<4x72xf32>
    %65 = arith.cmpf ole, %60, %64 : vector<4x72xf32>
    %66 = arith.mulf %56, %63 : vector<4x72xf32>
    %cst_31 = arith.constant 1.000000e+00 : f32
    %67 = vector.broadcast %cst_31 : f32 to vector<4x72xf32>
    %68 = arith.select %65, %67, %66 : vector<4x72xi1>, vector<4x72xf32>
    %69 = arith.mulf %57, %68 : vector<4x72xf32>
    %70 = arith.mulf %55, %63 : vector<4x72xf32>
    %cst_32 = arith.constant 0.000000e+00 : f32
    %71 = vector.broadcast %cst_32 : f32 to vector<4x72xf32>
    %72 = arith.select %65, %71, %70 : vector<4x72xi1>, vector<4x72xf32>
    %73 = arith.mulf %57, %72 : vector<4x72xf32>
    %74 = vector.extract_strided_slice %69 {offsets = [0, 0], sizes = [2, 72], strides = [1, 1]} : vector<4x72xf32> to vector<2x72xf32>
    %75 = vector.extract_strided_slice %69 {offsets = [2, 0], sizes = [2, 72], strides = [1, 1]} : vector<4x72xf32> to vector<2x72xf32>
    %76 = arith.subf %74, %75 : vector<2x72xf32>
    %77 = vector.extract_strided_slice %73 {offsets = [0, 0], sizes = [2, 72], strides = [1, 1]} : vector<4x72xf32> to vector<2x72xf32>
    %78 = vector.extract_strided_slice %73 {offsets = [2, 0], sizes = [2, 72], strides = [1, 1]} : vector<4x72xf32> to vector<2x72xf32>
    %79 = arith.subf %77, %78 : vector<2x72xf32>
    %c0_33 = arith.constant 0 : index
    %c0_34 = arith.constant 0 : index
    %c0_35 = arith.constant 0 : index
    %80 = vector.load %arg4[%c0_33, %c0_34, %c0_35] : memref<2x72x28xf32, #tpu.memory_space<vmem>>, vector<1x72x28xf32>
    %81 = vector.shape_cast %80 : vector<1x72x28xf32> to vector<72x28xf32>
    %cst_36 = arith.constant dense<0.000000e+00> : vector<2x28xf32>
    %82 = tpu.matmul %76, %81, %cst_36 {dimension_numbers = #tpu.dot_dimension_numbers<[1], [0], [0], [1], [0, 0, 1, 1], [], []>} : vector<2x72xf32>, vector<72x28xf32>, vector<2x28xf32> -> vector<2x28xf32>
    %c1_37 = arith.constant 1 : index
    %c0_38 = arith.constant 0 : index
    %c0_39 = arith.constant 0 : index
    %83 = vector.load %arg4[%c1_37, %c0_38, %c0_39] : memref<2x72x28xf32, #tpu.memory_space<vmem>>, vector<1x72x28xf32>
    %84 = vector.shape_cast %83 : vector<1x72x28xf32> to vector<72x28xf32>
    %cst_40 = arith.constant dense<0.000000e+00> : vector<2x28xf32>
    %85 = tpu.matmul %79, %84, %cst_40 {dimension_numbers = #tpu.dot_dimension_numbers<[1], [0], [0], [1], [0, 0, 1, 1], [], []>} : vector<2x72xf32>, vector<72x28xf32>, vector<2x28xf32> -> vector<2x28xf32>
    %86 = arith.addf %82, %85 : vector<2x28xf32>
    %87 = math.absf %86 : vector<2x28xf32>
    %88 = vector.shape_cast %87 : vector<2x28xf32> to vector<1x2x28xf32>
    %cst_41 = arith.constant dense<0.000000e+00> : vector<1xf32>
    %89 = vector.multi_reduction <add>, %88, %cst_41 [1, 2] : vector<1x2x28xf32> to vector<1xf32>
    %90 = vector.shape_cast %89 : vector<1xf32> to vector<1x1x1xf32>
    %91 = vector.extract %90[0, 0, 0] : f32 from vector<1x1x1xf32>
    %cst_42 = arith.constant 0.0069444445 : f32
    %92 = arith.mulf %48, %cst_42 : f32
    %cst_43 = arith.constant 0.0069444445 : f32
    %93 = arith.mulf %53, %cst_43 : f32
    %94 = arith.addf %92, %93 : f32
    %cst_44 = arith.constant 5.000000e-01 : f32
    %95 = arith.mulf %cst_44, %91 : f32
    %cst_45 = arith.constant 0.0178571437 : f32
    %96 = arith.mulf %95, %cst_45 : f32
    %97 = arith.addf %94, %96 : f32
    %c0_46 = arith.constant 0 : index
    %98 = memref.load %arg5[%c0_46] : memref<1xf32, #tpu.memory_space<smem>>
    memref.store %97, %arg5[%c0_46] : memref<1xf32, #tpu.memory_space<smem>>
    return
  }
}

</mosaic_0001>

<llo_original>
// kernel: squeeze.2
$region0: #{squeeze.2}
  %s0 = inlined_call_operand.vmem [shape: bf16[1,2,8,9], index: 0, kind: input, shape index: {}]
  %s1 = inlined_call_operand.vmem [shape: bf16[2,72], index: 1, kind: output, shape index: {}]
  $region1: #{squeeze.2} parent=0
    #allocation0 [shape = 'u8[4096]{0}', space=vmem, size = 0x1000, scoped, tag = 'scoped mem for output reshape']
    #allocation1 [shape = 'u8[8192]{0}', space=vmem, size = 0x2000, scoped, tag = 'scoped mem for input reshape']
    %s3 = smul.u32 4, 2
    %s4 = sshllo.u32 0, %s3
    %s5 = scalar_lea.vmem %s0, 4
    %s6 = sshrl.u32 %s4, 1
    %s7 = sor.u32 %s4, %s6
    %s8 = sand.u32 %s7, 85
    %s9 = sshrl.u32 %s8, 1
    %s10 = sor.u32 %s8, %s9
    %s11 = sand.u32 51, %s10
    %s12 = sshrl.u32 %s11, 2
    %s13 = sor.u32 %s11, %s12
    %s14 = sand.u32 15, %s13
    %v15 = vld [vmem:[%s5] sm:%s14]
    %v16 = vunpack.c.l.bf16 %v15
    %v17 = vunpack.c.h.bf16 %v15
    %s18 = scalar_lea.vmem [#allocation1], 8
    %19 = vst [vmem:[%s18] sm:%s4] %v16
    %s20 = sshrl.u32 %s4, 1
    %s21 = sor.u32 %s4, %s20
    %s22 = sand.u32 %s21, 85
    %s23 = sshrl.u32 %s22, 1
    %s24 = sor.u32 %s22, %s23
    %s25 = sand.u32 51, %s24
    %s26 = sshrl.u32 %s25, 2
    %s27 = sor.u32 %s25, %s26
    %s28 = sand.u32 15, %s27
    %v29 = vld [vmem:[%s0] sm:%s28]
    %v30 = vunpack.c.l.bf16 %v29
    %v31 = vunpack.c.h.bf16 %v29
    %32 = vst [vmem:[#allocation1] sm:%s4] %v30
    %s33 = smov 3
    %v34 = vld [vmem:[#allocation1] ss:$8 sm:%s33]
    %vm35 = vcmask 72704
    %36 = vst.msk [vmem:[#allocation0] sm:$0x3] %vm35, %v34
    %s37 = scalar_lea.vmem [#allocation1], 7
    %s38 = smov 3
    %v39 = vld [vmem:[%s37] ss:$8 sm:%s38]
    %40 = vrot.lane.b32.xlu0 %v39, 63
    %v41 = vpop.permute.xlu0 %40
    %vm42 = vcmask 589304
    %43 = vst.msk [vmem:[#allocation0] sm:$0x3] %vm42, %v41
    %s44 = scalar_lea.vmem [#allocation1], 6
    %s45 = smov 3
    %v46 = vld [vmem:[%s44] ss:$8 sm:%s45]
    %47 = vrot.lane.b32.xlu0 %v46, 54
    %v48 = vpop.permute.xlu0 %47
    %vm49 = vcmask 515504
    %50 = vst.msk [vmem:[#allocation0] sm:$0x3] %vm49, %v48
    %s51 = scalar_lea.vmem [#allocation1], 5
    %s52 = smov 3
    %v53 = vld [vmem:[%s51] ss:$8 sm:%s52]
    %54 = vrot.lane.b32.xlu0 %v53, 45
    %v55 = vpop.permute.xlu0 %54
    %vm56 = vcmask 441704
    %57 = vst.msk [vmem:[#allocation0] sm:$0x3] %vm56, %v55
    %s58 = scalar_lea.vmem [#allocation1], 4
    %s59 = smov 3
    %v60 = vld [vmem:[%s58] ss:$8 sm:%s59]
    %61 = vrot.lane.b32.xlu0 %v60, 36
    %v62 = vpop.permute.xlu0 %61
    %vm63 = vcmask 367904
    %64 = vst.msk [vmem:[#allocation0] sm:$0x3] %vm63, %v62
    %s65 = scalar_lea.vmem [#allocation1], 3
    %s66 = smov 3
    %v67 = vld [vmem:[%s65] ss:$8 sm:%s66]
    %68 = vrot.lane.b32.xlu0 %v67, 27
    %v69 = vpop.permute.xlu0 %68
    %vm70 = vcmask 294104
    %71 = vst.msk [vmem:[#allocation0] sm:$0x3] %vm70, %v69
    %s72 = scalar_lea.vmem [#allocation1], 2
    %s73 = smov 3
    %v74 = vld [vmem:[%s72] ss:$8 sm:%s73]
    %75 = vrot.lane.b32.xlu0 %v74, 18
    %v76 = vpop.permute.xlu0 %75
    %vm77 = vcmask 220304
    %78 = vst.msk [vmem:[#allocation0] sm:$0x3] %vm77, %v76
    %s79 = scalar_lea.vmem [#allocation1], 1
    %s80 = smov 3
    %v81 = vld [vmem:[%s79] ss:$8 sm:%s80]
    %82 = vrot.lane.b32.xlu0 %v81, 9
    %v83 = vpop.permute.xlu0 %82
    %vm84 = vcmask 146504
    %85 = vst.msk [vmem:[#allocation0] sm:$0x3] %vm84, %v83
    %s87 = smul.u32 1, 2
    %s88 = sshllo.u32 0, %s87
    %s89 = sshrl.u32 %s87, 1
    %v90 = vld [vmem:[#allocation0] sm:%s88]
    %v91 = vpack.c.bf16 0.0, %v90
    %s92 = sshllo.u32 0, %s89
    %93 = vst [vmem:[%s1] sm:%s92] %v91

// kernel: cfm_forward.1
$region0: #{cfm_forward.1}
  #allocation0 [shape = 'u32[]', space=smem, size = 0x4, offset = 0x4, fixed_abs, tag = 'smem constant byte address 0x4 - core index']
  #allocation1 [shape = 'u32[144,128]{1,0:T(1,128)}', space=vmem, size = 0x12000, scoped, tag = 'internal scratch']
  %s0 = inlined_call_operand.vmem [shape: s32[2,2,1], index: 0, kind: input, shape index: {}]
  %s1 = inlined_call_operand.vmem [shape: f32[3,2,72], index: 1, kind: input, shape index: {}]
  %s2 = inlined_call_operand.vmem [shape: bf16[2,81], index: 2, kind: input, shape index: {}]
  %s3 = inlined_call_operand.vmem [shape: bf16[3,81,72], index: 3, kind: input, shape index: {}]
  %s4 = inlined_call_operand.vmem [shape: f32[2,72,28], index: 4, kind: input, shape index: {}]
  %s5 = inlined_call_operand.hbm [shape: f32[1], index: 5, kind: output, shape index: {}]
  %s6 = sld [smem:[#allocation0]]
  $region30: #{cfm_forward.1} parent=0
    _
  %s8 = ssub.s32 1, %s6
  %s9 = scalar_select 0, %s8, %s6
  $region1: #{cfm_forward.1} parent=0
    #allocation2 [shape = 'u8[512]{0}', space=smem, size = 0x200, scoped, tag = 'output window, operand 0, single buffered']
    #allocation3 [shape = 's32[1]{0}', space=sflag, size = 0x4, scoped, tag = 'scoped memory for cfm_forward.1']
    %10 = vsyncpa [#allocation3], 0
    // Predicated region
    $region2: #{cfm_forward.1} parent=1 // pred_check
      _
    $region3: #{cfm_forward.1} parent=1 // pred_check_branch
      %12 = sbr.rel (0) target = $region5
    $region4: #{cfm_forward.1} parent=1 // pred_region
      _
    $region5: #{cfm_forward.1} parent=1 // pred_fallthru
      _
    // Predicated region
    $region6: #{cfm_forward.1} parent=1 // pred_check
      _
    $region7: #{cfm_forward.1} parent=1 // pred_check_branch
      %14 = sbr.rel (0) target = $region9
    $region8: #{cfm_forward.1} parent=1 // pred_region
      _
    $region9: #{cfm_forward.1} parent=1 // pred_fallthru
      _
    // Predicated region
    $region10: #{cfm_forward.1} parent=1 // pred_check
      _
    $region11: #{cfm_forward.1} parent=1 // pred_check_branch
      %16 = sbr.rel (0) target = $region13
    $region12: #{cfm_forward.1} parent=1 // pred_region
      _
    $region13: #{cfm_forward.1} parent=1 // pred_fallthru
      _
    // Predicated region
    $region14: #{cfm_forward.1} parent=1 // pred_check
      _
    $region15: #{cfm_forward.1} parent=1 // pred_check_branch
      %18 = sbr.rel (0) target = $region17
    $region16: #{cfm_forward.1} parent=1 // pred_region
      _
    $region17: #{cfm_forward.1} parent=1 // pred_fallthru
      _
    // Predicated region
    $region18: #{cfm_forward.1} parent=1 // pred_check
      _
    $region19: #{cfm_forward.1} parent=1 // pred_check_branch
      %20 = sbr.rel (0) target = $region21
    $region20: #{cfm_forward.1} parent=1 // pred_region
      _
    $region21: #{cfm_forward.1} parent=1 // pred_fallthru
      _
    %v22 = vld [vmem:[%s1] sm:$0x3]
    %s23 = scalar_lea.vmem %s1, 2
    %v24 = vld [vmem:[%s23] sm:$0x3]
    %s25 = scalar_lea.vmem %s1, 4
    %v26 = vld [vmem:[%s25] sm:$0x3]
    %v27 = vld [vmem:[%s2] sm:$0x1]
    %v28 = vld [vmem:[%s3] sm:$0xf]
    %v29 = vld [vmem:[%s3 + $0x4] sm:$0xf]
    %v30 = vld [vmem:[%s3 + $0x8] sm:$0xf]
    %v31 = vld [vmem:[%s3 + $0xc] sm:$0xf]
    %v32 = vld [vmem:[%s3 + $0x10] sm:$0xf]
    %v33 = vld [vmem:[%s3 + $0x14] sm:$0xf]
    %v34 = vld [vmem:[%s3 + $0x18] sm:$0xf]
    %v35 = vld [vmem:[%s3 + $0x1c] sm:$0xf]
    %v36 = vld [vmem:[%s3 + $0x20] sm:$0xf]
    %v37 = vld [vmem:[%s3 + $0x24] sm:$0xf]
    %v38 = vld [vmem:[%s3 + $0x28] sm:$0x1]
    %v50 = vunpack.c.l.b16 %v28
    %v51 = vunpack.c.l.b16 %v29
    %v52 = vunpack.c.l.b16 %v30
    %v53 = vunpack.c.l.b16 %v31
    %v54 = vunpack.c.l.b16 %v32
    %v55 = vunpack.c.l.b16 %v33
    %v56 = vunpack.c.l.b16 %v34
    %v57 = vunpack.c.l.b16 %v35
    %v58 = vunpack.c.l.b16 %v36
    %v59 = vunpack.c.l.b16 %v37
    %v60 = vunpack.c.l.b16 %v38
    %v61 = vpack.c.b16 %v51, %v50
    %v62 = vpack.c.b16 %v53, %v52
    %v63 = vpack.c.b16 %v55, %v54
    %v64 = vpack.c.b16 %v57, %v56
    %v65 = vpack.c.b16 %v59, %v58
    %v66 = vpack.c.b16 %v60, %v60
    %vm72 = vcmask 662528
    %v74 = vsel %vm72, %v27, 0
    %vm76 = vcmask 1040384
    %v77 = vsel 0, 4294967295, 65535
    %v78 = vsel %vm76, %v77, 0
    %v80 = vand.u32 %v66, %v78
    %82 = vmatprep.subr.bf16.mxu0 0
    %83 = vmatpush1.bf16.msra.mxu0 %v61
    %84 = vmatprep.subr.bf16.mxu0 0
    %85 = vmatpush1.bf16.msra.mxu0 %v62
    %86 = vmatprep.subr.bf16.mxu0 0
    %87 = vmatpush1.bf16.msra.mxu0 %v63
    %88 = vmatprep.subr.bf16.mxu0 0
    %89 = vmatpush1.bf16.msra.mxu0 %v64
    %90 = vmatprep.subr.bf16.mxu0 0
    %91 = vmatpush1.bf16.msra.mxu0 %v65
    %92 = vmatprep.subr.bf16.mxu0 0
    %93 = vmatpush1.bf16.msra.mxu0 %v80
    %94 = vmatprep.subr.bf16.mxu0 0
    %95 = vmatpush1.bf16.msra.mxu0 0
    %96 = vmatprep.subr.bf16.mxu0 0
    %97 = vmatpush1.bf16.msra.mxu0 0
    %98 = vmatprep.subr.bf16.mxu0 0
    %99 = vmatpush1.bf16.msra.mxu0 0
    %100 = vmatprep.subr.bf16.mxu0 0
    %101 = vmatpush1.bf16.msra.mxu0 0
    %102 = vmatprep.subr.bf16.mxu0 0
    %103 = vmatpush1.bf16.msra.mxu0 0
    %104 = vmatprep.subr.bf16.mxu0 0
    %105 = vmatpush1.bf16.msra.mxu0 0
    %106 = vmatprep.subr.bf16.mxu0 0
    %107 = vmatpush1.bf16.msra.mxu0 0
    %108 = vmatprep.subr.bf16.mxu0 0
    %109 = vmatpush1.bf16.msra.mxu0 0
    %110 = vmatprep.subr.bf16.mxu0 0
    %111 = vmatpush1.bf16.msra.mxu0 0
    %112 = vmatprep.subr.bf16.mxu0 0
    %113 = vmatpush1.bf16.msra.mxu0 0
    %114 = vmatprep.mubr.bf16.mxu0 0
    %115 = vmatmul.mubr.bf16.gmra.mrb[0].mxu0 %v74
    %v116 = vpop.f32.mrb[0].mxu0
    %v117 = vadd.f32 0.0, %v116
    %v118 = vpop.f32.mrb[0].mxu0
    %v119 = vpop.f32.mrb[0].mxu0
    %v120 = vpop.f32.mrb[0].mxu0
    %121 = vdwg.mxu0
    %s122 = scalar_lea.vmem %s3, 44
    %v123 = vld [vmem:[%s122] sm:$0xf]
    %v124 = vld [vmem:[%s122 + $0x4] sm:$0xf]
    %v125 = vld [vmem:[%s122 + $0x8] sm:$0xf]
    %v126 = vld [vmem:[%s122 + $0xc] sm:$0xf]
    %v127 = vld [vmem:[%s122 + $0x10] sm:$0xf]
    %v128 = vld [vmem:[%s122 + $0x14] sm:$0xf]
    %v129 = vld [vmem:[%s122 + $0x18] sm:$0xf]
    %v130 = vld [vmem:[%s122 + $0x1c] sm:$0xf]
    %v131 = vld [vmem:[%s122 + $0x20] sm:$0xf]
    %v132 = vld [vmem:[%s122 + $0x24] sm:$0xf]
    %v133 = vld [vmem:[%s122 + $0x28] sm:$0x1]
    %v145 = vunpack.c.l.b16 %v123
    %v146 = vunpack.c.l.b16 %v124
    %v147 = vunpack.c.l.b16 %v125
    %v148 = vunpack.c.l.b16 %v126
    %v149 = vunpack.c.l.b16 %v127
    %v150 = vunpack.c.l.b16 %v128
    %v151 = vunpack.c.l.b16 %v129
    %v152 = vunpack.c.l.b16 %v130
    %v153 = vunpack.c.l.b16 %v131
    %v154 = vunpack.c.l.b16 %v132
    %v155 = vunpack.c.l.b16 %v133
    %v156 = vpack.c.b16 %v146, %v145
    %v157 = vpack.c.b16 %v148, %v147
    %v158 = vpack.c.b16 %v150, %v149
    %v159 = vpack.c.b16 %v152, %v151
    %v160 = vpack.c.b16 %v154, %v153
    %v161 = vpack.c.b16 %v155, %v155
    %v168 = vand.u32 %v161, %v78
    %170 = vmatprep.subr.bf16.mxu0 0
    %171 = vmatpush1.bf16.msra.mxu0 %v156
    %172 = vmatprep.subr.bf16.mxu0 0
    %173 = vmatpush1.bf16.msra.mxu0 %v157
    %174 = vmatprep.subr.bf16.mxu0 0
    %175 = vmatpush1.bf16.msra.mxu0 %v158
    %176 = vmatprep.subr.bf16.mxu0 0
    %177 = vmatpush1.bf16.msra.mxu0 %v159
    %178 = vmatprep.subr.bf16.mxu0 0
    %179 = vmatpush1.bf16.msra.mxu0 %v160
    %180 = vmatprep.subr.bf16.mxu0 0
    %181 = vmatpush1.bf16.msra.mxu0 %v168
    %182 = vmatprep.subr.bf16.mxu0 0
    %183 = vmatpush1.bf16.msra.mxu0 0
    %184 = vmatprep.subr.bf16.mxu0 0
    %185 = vmatpush1.bf16.msra.mxu0 0
    %186 = vmatprep.subr.bf16.mxu0 0
    %187 = vmatpush1.bf16.msra.mxu0 0
    %188 = vmatprep.subr.bf16.mxu0 0
    %189 = vmatpush1.bf16.msra.mxu0 0
    %190 = vmatprep.subr.bf16.mxu0 0
    %191 = vmatpush1.bf16.msra.mxu0 0
    %192 = vmatprep.subr.bf16.mxu0 0
    %193 = vmatpush1.bf16.msra.mxu0 0
    %194 = vmatprep.subr.bf16.mxu0 0
    %195 = vmatpush1.bf16.msra.mxu0 0
    %196 = vmatprep.subr.bf16.mxu0 0
    %197 = vmatpush1.bf16.msra.mxu0 0
    %198 = vmatprep.subr.bf16.mxu0 0
    %199 = vmatpush1.bf16.msra.mxu0 0
    %200 = vmatprep.subr.bf16.mxu0 0
    %201 = vmatpush1.bf16.msra.mxu0 0
    %202 = vmatprep.mubr.bf16.mxu0 0
    %203 = vmatmul.mubr.bf16.gmra.mrb[0].mxu0 %v74
    %v204 = vpop.f32.mrb[0].mxu0
    %v205 = vadd.f32 0.0, %v204
    %v206 = vpop.f32.mrb[0].mxu0
    %v207 = vpop.f32.mrb[0].mxu0
    %v208 = vpop.f32.mrb[0].mxu0
    %209 = vdwg.mxu0
    %s210 = scalar_lea.vmem %s3, 88
    %v211 = vld [vmem:[%s210] sm:$0xf]
    %v212 = vld [vmem:[%s210 + $0x4] sm:$0xf]
    %v213 = vld [vmem:[%s210 + $0x8] sm:$0xf]
    %v214 = vld [vmem:[%s210 + $0xc] sm:$0xf]
    %v215 = vld [vmem:[%s210 + $0x10] sm:$0xf]
    %v216 = vld [vmem:[%s210 + $0x14] sm:$0xf]
    %v217 = vld [vmem:[%s210 + $0x18] sm:$0xf]
    %v218 = vld [vmem:[%s210 + $0x1c] sm:$0xf]
    %v219 = vld [vmem:[%s210 + $0x20] sm:$0xf]
    %v220 = vld [vmem:[%s210 + $0x24] sm:$0xf]
    %v221 = vld [vmem:[%s210 + $0x28] sm:$0x1]
    %v233 = vunpack.c.l.b16 %v211
    %v234 = vunpack.c.l.b16 %v212
    %v235 = vunpack.c.l.b16 %v213
    %v236 = vunpack.c.l.b16 %v214
    %v237 = vunpack.c.l.b16 %v215
    %v238 = vunpack.c.l.b16 %v216
    %v239 = vunpack.c.l.b16 %v217
    %v240 = vunpack.c.l.b16 %v218
    %v241 = vunpack.c.l.b16 %v219
    %v242 = vunpack.c.l.b16 %v220
    %v243 = vunpack.c.l.b16 %v221
    %v244 = vpack.c.b16 %v234, %v233
    %v245 = vpack.c.b16 %v236, %v235
    %v246 = vpack.c.b16 %v238, %v237
    %v247 = vpack.c.b16 %v240, %v239
    %v248 = vpack.c.b16 %v242, %v241
    %v249 = vpack.c.b16 %v243, %v243
    %v256 = vand.u32 %v249, %v78
    %258 = vmatprep.subr.bf16.mxu0 0
    %259 = vmatpush1.bf16.msra.mxu0 %v244
    %260 = vmatprep.subr.bf16.mxu0 0
    %261 = vmatpush1.bf16.msra.mxu0 %v245
    %262 = vmatprep.subr.bf16.mxu0 0
    %263 = vmatpush1.bf16.msra.mxu0 %v246
    %264 = vmatprep.subr.bf16.mxu0 0
    %265 = vmatpush1.bf16.msra.mxu0 %v247
    %266 = vmatprep.subr.bf16.mxu0 0
    %267 = vmatpush1.bf16.msra.mxu0 %v248
    %268 = vmatprep.subr.bf16.mxu0 0
    %269 = vmatpush1.bf16.msra.mxu0 %v256
    %270 = vmatprep.subr.bf16.mxu0 0
    %271 = vmatpush1.bf16.msra.mxu0 0
    %272 = vmatprep.subr.bf16.mxu0 0
    %273 = vmatpush1.bf16.msra.mxu0 0
    %274 = vmatprep.subr.bf16.mxu0 0
    %275 = vmatpush1.bf16.msra.mxu0 0
    %276 = vmatprep.subr.bf16.mxu0 0
    %277 = vmatpush1.bf16.msra.mxu0 0
    %278 = vmatprep.subr.bf16.mxu0 0
    %279 = vmatpush1.bf16.msra.mxu0 0
    %280 = vmatprep.subr.bf16.mxu0 0
    %281 = vmatpush1.bf16.msra.mxu0 0
    %282 = vmatprep.subr.bf16.mxu0 0
    %283 = vmatpush1.bf16.msra.mxu0 0
    %284 = vmatprep.subr.bf16.mxu0 0
    %285 = vmatpush1.bf16.msra.mxu0 0
    %286 = vmatprep.subr.bf16.mxu0 0
    %287 = vmatpush1.bf16.msra.mxu0 0
    %288 = vmatprep.subr.bf16.mxu0 0
    %289 = vmatpush1.bf16.msra.mxu0 0
    %290 = vmatprep.mubr.bf16.mxu0 0
    %291 = vmatmul.mubr.bf16.gmra.mrb[0].mxu0 %v74
    %v292 = vpop.f32.mrb[0].mxu0
    %v293 = vadd.f32 0.0, %v292
    %v294 = vpop.f32.mrb[0].mxu0
    %v295 = vpop.f32.mrb[0].mxu0
    %v296 = vpop.f32.mrb[0].mxu0
    %297 = vdwg.mxu0
    %v298 = vld [vmem:[%s0] sm:$0x3]
    %s299 = scalar_lea.vmem %s0, 2
    %v300 = vld [vmem:[%s299] sm:$0x3]
    %v301 = vlaneseq
    %v302 = vand.u32 %v301, 127
    %v303 = vmul.u32 %v298, 9
    %304 = vset.pattern.permute.xlu0 0
    %305 = vperm.xlu0 %304, %v303
    %v306 = vpop.permute.xlu0 %305
    %vm307 = vcmp.ge.s32.totalorder %v302, %v306
    %v308 = vmul.u32 %v300, 9
    %309 = vset.pattern.permute.xlu0 0
    %310 = vperm.xlu0 %309, %v308
    %v311 = vpop.permute.xlu0 %310
    %vm312 = vcmp.lt.s32.totalorder %v302, %v311
    %vm313 = vmand %vm307, %vm312
    %v314 = vsel %vm313, 1, 0
    %v315 = vcvt.s32.f32 %v314
    %v316 = vsub.f32 %v117, %v22
    %v317 = vmul.f32 %v316, %v316
    %v318 = vmul.f32 %v317, %v315
    %v319 = vsub.f32 %v205, %v24
    %v320 = vmul.f32 %v319, %v319
    %v321 = vsub.f32 %v293, %v26
    %v322 = vmul.f32 %v321, %v321
    %v323 = vadd.f32 %v320, %v322
    %v324 = vmul.f32 %v323, %v315
    %v326 = vrot.slane %v324, 6
    %vm328 = vcmask 1041408
    %v329 = vsel %vm328, %v318, %v326
    %vm330 = vcmask 584704
    %v331 = vsel %vm330, %v329, 0.0
    %332 = vadd.xlane.f32.xlu0 %v331
    %v333 = vpop.xlane.xlu0 %332
    %vm334 = vcmask 1024
    %v335 = vsel %vm334, %v333, 0.0
    %336 = vadd.xlane.f32.xlu0 %v335
    %v337 = vpop.xlane.xlu0 %336
    %v338 = vrot.slane %v337, 4
    %v339 = vadd.f32 %v337, %v338
    %v340 = vrot.slane %v339, 2
    %v341 = vadd.f32 %v339, %v340
    %v342 = vrot.slane %v341, 1
    %v343 = vadd.f32 %v341, %v342
    %s344 = vtos %v343
    %v346 = vrot.slane %v333, 2
    %v348 = vsel %vm334, %v346, 0.0
    %349 = vadd.xlane.f32.xlu0 %v348
    %v350 = vpop.xlane.xlu0 %349
    %v351 = vrot.slane %v350, 4
    %v352 = vadd.f32 %v350, %v351
    %v353 = vrot.slane %v352, 2
    %v354 = vadd.f32 %v352, %v353
    %v355 = vrot.slane %v354, 1
    %v356 = vadd.f32 %v354, %v355
    %s357 = vtos %v356
    %v359 = vrot.slane %v22, 6
    %v361 = vsel %vm328, %v117, %v359
    %v363 = vrot.slane %v24, 6
    %v365 = vsel %vm328, %v205, %v363
    %v367 = vrot.slane %v26, 6
    %v369 = vsel %vm328, %v293, %v367
    %v370 = vmul.f32 %v361, 1.442695
    %v371 = vpow.pop %v370
    %v372 = vmul.f32 %v365, %v365
    %v373 = vmul.f32 %v369, %v369
    %v374 = vadd.f32 %v372, %v373
    %v375 = vmax.f32 %v374, 1e-12
    %v376 = vrsqrt.pop %v375
    %vm377 = vcmp.le.f32.partialorder %v374, 0.0
    %v378 = vmul.f32 %v369, %v376
    %v379 = vsel %vm377, 1.0, %v378
    %v380 = vmul.f32 %v371, %v379
    %v381 = vmul.f32 %v365, %v376
    %v382 = vsel %vm377, 0.0, %v381
    %v383 = vmul.f32 %v371, %v382
    %v385 = vrot.slane %v380, 2
    %v387 = vsub.f32 %v380, %v385
    %v389 = vrot.slane %v383, 2
    %v391 = vsub.f32 %v383, %v389
    %v392 = vld [vmem:[%s4] sm:$0xff]
    %v393 = vld [vmem:[%s4 + $0x8] sm:$0xff]
    %v394 = vld [vmem:[%s4 + $0x10] sm:$0xff]
    %v395 = vld [vmem:[%s4 + $0x18] sm:$0xff]
    %v396 = vld [vmem:[%s4 + $0x20] sm:$0xff]
    %v397 = vld [vmem:[%s4 + $0x28] sm:$0xff]
    %v398 = vld [vmem:[%s4 + $0x30] sm:$0xff]
    %v399 = vld [vmem:[%s4 + $0x38] sm:$0xff]
    %v400 = vld [vmem:[%s4 + $0x40] sm:$0xff]
    %s401 = scalar_lea.vmem %s4, 72
    %v402 = vld [vmem:[%s401] sm:$0xff]
    %v403 = vld [vmem:[%s401 + $0x8] sm:$0xff]
    %v404 = vld [vmem:[%s401 + $0x10] sm:$0xff]
    %v405 = vld [vmem:[%s401 + $0x18] sm:$0xff]
    %v406 = vld [vmem:[%s401 + $0x20] sm:$0xff]
    %v407 = vld [vmem:[%s401 + $0x28] sm:$0xff]
    %v408 = vld [vmem:[%s401 + $0x30] sm:$0xff]
    %v409 = vld [vmem:[%s401 + $0x38] sm:$0xff]
    %v410 = vld [vmem:[%s401 + $0x40] sm:$0xff]
    %vm411 = vcmask 588800
    %v413 = vsel %vm411, %v391, 0
    %415 = vmatprep.subr.mxu0 0.0
    %416 = vmatpush1.msra.mxu0 %v402
    %417 = vmatprep.subr.mxu0 0.0
    %418 = vmatpush1.msra.mxu0 %v403
    %419 = vmatprep.subr.mxu0 0.0
    %420 = vmatpush1.msra.mxu0 %v404
    %421 = vmatprep.subr.mxu0 0.0
    %422 = vmatpush1.msra.mxu0 %v405
    %423 = vmatprep.subr.mxu0 0.0
    %424 = vmatpush1.msra.mxu0 %v406
    %425 = vmatprep.subr.mxu0 0.0
    %426 = vmatpush1.msra.mxu0 %v407
    %427 = vmatprep.subr.mxu0 0.0
    %428 = vmatpush1.msra.mxu0 %v408
    %429 = vmatprep.subr.mxu0 0.0
    %430 = vmatpush1.msra.mxu0 %v409
    %431 = vmatprep.subr.mxu0 0.0
    %432 = vmatpush1.msra.mxu0 %v410
    %433 = vmatprep.subr.mxu0 0.0
    %434 = vmatpush1.msra.mxu0 0.0
    %435 = vmatprep.subr.mxu0 0.0
    %436 = vmatpush1.msra.mxu0 0.0
    %437 = vmatprep.subr.mxu0 0.0
    %438 = vmatpush1.msra.mxu0 0.0
    %439 = vmatprep.subr.mxu0 0.0
    %440 = vmatpush1.msra.mxu0 0.0
    %441 = vmatprep.subr.mxu0 0.0
    %442 = vmatpush1.msra.mxu0 0.0
    %443 = vmatprep.subr.mxu0 0.0
    %444 = vmatpush1.msra.mxu0 0.0
    %445 = vmatprep.subr.mxu0 0.0
    %446 = vmatpush1.msra.mxu0 0.0
    %447 = vmatprep.subr.mxu0 0.0
    %448 = vmatpush1.msra.mxu0 0.0
    %449 = vmatprep.subr.mxu0 0.0
    %450 = vmatpush1.msra.mxu0 0.0
    %451 = vmatprep.subr.mxu0 0.0
    %452 = vmatpush1.msra.mxu0 0.0
    %453 = vmatprep.subr.mxu0 0.0
    %454 = vmatpush1.msra.mxu0 0.0
    %455 = vmatprep.subr.mxu0 0.0
    %456 = vmatpush1.msra.mxu0 0.0
    %457 = vmatprep.subr.mxu0 0.0
    %458 = vmatpush1.msra.mxu0 0.0
    %459 = vmatprep.subr.mxu0 0.0
    %460 = vmatpush1.msra.mxu0 0.0
    %461 = vmatprep.subr.mxu0 0.0
    %462 = vmatpush1.msra.mxu0 0.0
    %463 = vmatprep.subr.mxu0 0.0
    %464 = vmatpush1.msra.mxu0 0.0
    %465 = vmatprep.subr.mxu0 0.0
    %466 = vmatpush1.msra.mxu0 0.0
    %467 = vmatprep.subr.mxu0 0.0
    %468 = vmatpush1.msra.mxu0 0.0
    %469 = vmatprep.subr.mxu0 0.0
    %470 = vmatpush1.msra.mxu0 0.0
    %471 = vmatprep.subr.mxu0 0.0
    %472 = vmatpush1.msra.mxu0 0.0
    %473 = vmatprep.subr.mxu0 0.0
    %474 = vmatpush1.msra.mxu0 0.0
    %475 = vmatprep.subr.mxu0 0.0
    %476 = vmatpush1.msra.mxu0 0.0
    %477 = vmatprep.subr.mxu0 0.0
    %478 = vmatpush1.msra.mxu0 0.0
    %479 = vmatprep.mubr.f32.mxu0 0.0
    %480 = vmatmul.mubr.f32.gmra.mrb[0].mxu0 %v413
    %v481 = vpop.f32.mrb[0].mxu0
    %v482 = vadd.f32 0.0, %v481
    %v483 = vpop.f32.mrb[0].mxu0
    %484 = vdwg.mxu0
    %v486 = vsel %vm411, %v387, 0
    %488 = vmatprep.subr.mxu0 0.0
    %489 = vmatpush1.msra.mxu0 %v392
    %490 = vmatprep.subr.mxu0 0.0
    %491 = vmatpush1.msra.mxu0 %v393
    %492 = vmatprep.subr.mxu0 0.0
    %493 = vmatpush1.msra.mxu0 %v394
    %494 = vmatprep.subr.mxu0 0.0
    %495 = vmatpush1.msra.mxu0 %v395
    %496 = vmatprep.subr.mxu0 0.0
    %497 = vmatpush1.msra.mxu0 %v396
    %498 = vmatprep.subr.mxu0 0.0
    %499 = vmatpush1.msra.mxu0 %v397
    %500 = vmatprep.subr.mxu0 0.0
    %501 = vmatpush1.msra.mxu0 %v398
    %502 = vmatprep.subr.mxu0 0.0
    %503 = vmatpush1.msra.mxu0 %v399
    %504 = vmatprep.subr.mxu0 0.0
    %505 = vmatpush1.msra.mxu0 %v400
    %506 = vmatprep.subr.mxu0 0.0
    %507 = vmatpush1.msra.mxu0 0.0
    %508 = vmatprep.subr.mxu0 0.0
    %509 = vmatpush1.msra.mxu0 0.0
    %510 = vmatprep.subr.mxu0 0.0
    %511 = vmatpush1.msra.mxu0 0.0
    %512 = vmatprep.subr.mxu0 0.0
    %513 = vmatpush1.msra.mxu0 0.0
    %514 = vmatprep.subr.mxu0 0.0
    %515 = vmatpush1.msra.mxu0 0.0
    %516 = vmatprep.subr.mxu0 0.0
    %517 = vmatpush1.msra.mxu0 0.0
    %518 = vmatprep.subr.mxu0 0.0
    %519 = vmatpush1.msra.mxu0 0.0
    %520 = vmatprep.subr.mxu0 0.0
    %521 = vmatpush1.msra.mxu0 0.0
    %522 = vmatprep.subr.mxu0 0.0
    %523 = vmatpush1.msra.mxu0 0.0
    %524 = vmatprep.subr.mxu0 0.0
    %525 = vmatpush1.msra.mxu0 0.0
    %526 = vmatprep.subr.mxu0 0.0
    %527 = vmatpush1.msra.mxu0 0.0
    %528 = vmatprep.subr.mxu0 0.0
    %529 = vmatpush1.msra.mxu0 0.0
    %530 = vmatprep.subr.mxu0 0.0
    %531 = vmatpush1.msra.mxu0 0.0
    %532 = vmatprep.subr.mxu0 0.0
    %533 = vmatpush1.msra.mxu0 0.0
    %534 = vmatprep.subr.mxu0 0.0
    %535 = vmatpush1.msra.mxu0 0.0
    %536 = vmatprep.subr.mxu0 0.0
    %537 = vmatpush1.msra.mxu0 0.0
    %538 = vmatprep.subr.mxu0 0.0
    %539 = vmatpush1.msra.mxu0 0.0
    %540 = vmatprep.subr.mxu0 0.0
    %541 = vmatpush1.msra.mxu0 0.0
    %542 = vmatprep.subr.mxu0 0.0
    %543 = vmatpush1.msra.mxu0 0.0
    %544 = vmatprep.subr.mxu0 0.0
    %545 = vmatpush1.msra.mxu0 0.0
    %546 = vmatprep.subr.mxu0 0.0
    %547 = vmatpush1.msra.mxu0 0.0
    %548 = vmatprep.subr.mxu0 0.0
    %549 = vmatpush1.msra.mxu0 0.0
    %550 = vmatprep.subr.mxu0 0.0
    %551 = vmatpush1.msra.mxu0 0.0
    %552 = vmatprep.mubr.f32.mxu0 0.0
    %553 = vmatmul.mubr.f32.gmra.mrb[0].mxu0 %v486
    %v554 = vpop.f32.mrb[0].mxu0
    %v555 = vadd.f32 %v482, %v554
    %v556 = vpop.f32.mrb[0].mxu0
    %557 = vdwg.mxu0
    %v558 = vand.u32 2147483647, %v555
    %vm559 = vcmask 222208
    %v560 = vsel %vm559, %v558, 0.0
    %561 = vadd.xlane.f32.xlu0 %v560
    %v562 = vpop.xlane.xlu0 %561
    %v563 = vrot.slane %v562, 4
    %v564 = vadd.f32 %v562, %v563
    %v565 = vrot.slane %v564, 2
    %v566 = vadd.f32 %v564, %v565
    %v567 = vrot.slane %v566, 1
    %v568 = vadd.f32 %v566, %v567
    %s569 = vtos %v568
    %s570 = smul.f32 %s344, 0.0069444445
    %s571 = smul.f32 %s357, 0.0069444445
    %s572 = sadd.f32 %s570, %s571
    %s573 = smul.f32 %s569, 0.5
    %s574 = smul.f32 %s573, 0.017857144
    %s575 = sadd.f32 %s572, %s574
    %s576 = scalar_lea.smem [#allocation2], 0
    %577 = sst [smem:[%s576]] %s575
    // Predicated region
    $region22: #{cfm_forward.1} parent=1 // pred_check
      _
    $region23: #{cfm_forward.1} parent=1 // pred_check_branch
      %579 = sbr.rel (0) target = $region25
    $region24: #{cfm_forward.1} parent=1 // pred_region
      %s581 = ssub.s32 16, 16
      %582 = vsyncadd [#allocation3], %s581
      %585 = dma.smem_to_hbm [#allocation2], 16, %s5, [#allocation3]
    $region25: #{cfm_forward.1} parent=1 // pred_fallthru
      _
    // Predicated region
    $region26: #{cfm_forward.1} parent=1 // pred_check
      _
    $region27: #{cfm_forward.1} parent=1 // pred_check_branch
      %587 = sbr.rel (0) target = $region29
    $region28: #{cfm_forward.1} parent=1 // pred_region
      %588 = dma.done [#allocation3], 16
    $region29: #{cfm_forward.1} parent=1 // pred_fallthru
      _
    %589 = sfence
    %590 = vsyncpa [#allocation3], 1

</llo_original>
